<compile_context>
chip_gen: v6e
topology: v6e:2x2x1
jax: 0.10.0
libtpu: 0.0.40
codegen_flags: <defaults>
</compile_context>

<pallas_src>
import numpy as np
import jax
import jax.numpy as jnp
from jax import lax
from jax.experimental import pallas as pl
from jax.experimental.pallas import tpu as pltpu


def _bilinear_matrix(n_in: int, n_out: int) -> np.ndarray:
    """Interpolation matrix M (n_out, n_in) so that y = M @ x reproduces
    torch.nn.Upsample(mode='bilinear', align_corners=False) along one axis."""
    scale = n_in / n_out
    dst = np.arange(n_out)
    src = (dst + 0.5) * scale - 0.5
    src = np.maximum(src, 0.0)              # PyTorch clamps negative source coords
    i0 = np.floor(src).astype(np.int64)
    frac = src - i0
    i0 = np.clip(i0, 0, n_in - 1)
    i1 = np.clip(i0 + 1, 0, n_in - 1)
    m = np.zeros((n_out, n_in), np.float32)
    m[dst, i0] += (1.0 - frac).astype(np.float32)
    m[dst, i1] += frac.astype(np.float32)
    return m


def _shifted_stack(m: np.ndarray) -> np.ndarray:
    """Given M (n_out, n_in), return S (3, n_out, n_in) with
    S[d, o, :] = M[o + d - 1, :] when the shifted row is in range, else 0.
    This folds the conv's +/-1 offset and the zero padding along that axis."""
    n_out = m.shape[0]
    s = np.zeros((3,) + m.shape, np.float32)
    for d in range(3):
        lo = max(0, 1 - d)                  # valid o range: 0 <= o + d - 1 < n_out
        hi = min(n_out, n_out + 1 - d)
        o = np.arange(lo, hi)
        s[d, o, :] = m[o + d - 1, :]
    return s


def _make_kernel(cout_wup: int):
    def kernel(x_ref, uh_ref, c_ref, bias_ref, o_ref):
        # x_ref:    (H, Cin*W)            VMEM  input rows, all channels lane-packed
        # uh_ref:   (3, Hup, H)           VMEM  row-upsample matrices (one per dy)
        # c_ref:    (Cin*W, 3*Cout*Wup)   VMEM  fused col-upsample + conv matrix
        # bias_ref: (1, Cout*Wup)         VMEM  bias replicated along Wup
        # o_ref:    (Hup, Cout*Wup)       VMEM  lane-dense output block
        cw = cout_wup

        # One MXU matmul does the column upsample, the dx shifts, the
        # horizontal zero padding and the channel mix for all three dy at once.
        y = jnp.dot(x_ref[...].astype(jnp.float32), c_ref[...],
                    preferred_element_type=jnp.float32)      # (H, 3*Cout*Wup)

        # Row upsample + dy shift + vertical zero padding: three MXU matmuls.
        # The lane slices of `y` start at multiples of Cout*Wup (>=128-aligned
        # at these shapes) so they are free vreg selections.
        acc = jnp.dot(uh_ref[0], y[:, :cw],
                      preferred_element_type=jnp.float32)
        acc = acc + jnp.dot(uh_ref[1], y[:, cw:2 * cw],
                            preferred_element_type=jnp.float32)
        acc = acc + jnp.dot(uh_ref[2], y[:, 2 * cw:],
                            preferred_element_type=jnp.float32)

        # Bias added once in the epilogue (broadcast over sublanes).
        o_ref[...] = (acc + bias_ref[...]).astype(o_ref.dtype)

    return kernel


def upsample_conv(x, weight, bias):
    """Pallas implementation of UpsampleConv.forward (NCHW in, NCHW out)."""
    N, Cin, H, W = x.shape
    Cout = weight.shape[0]
    Hup, Wup = 2 * H, 2 * W
    cout_wup = Cout * Wup

    # ---- host-side constant matrices -------------------------------------
    uh = _bilinear_matrix(H, Hup)                     # (Hup, H)
    uw = _bilinear_matrix(W, Wup)                     # (Wup, W)

    # UH_dy[yo, h] = UH[yo+dy-1, h] (0 outside) : vertical shift + pad folded in.
    uh3 = jnp.asarray(_shifted_stack(uh))             # (3, Hup, H)

    # uw_shift[dx, xo, w] = UW[xo+dx-1, w] (0 outside) : horizontal shift + pad.
    uw_shift = jnp.asarray(_shifted_stack(uw))        # (3, Wup, W)

    # C_cat[ci*W + w, dy*Cout*Wup + co*Wup + xo]
    #   = sum_dx weight[co, ci, dy, dx] * uw_shift[dx, xo, w]
    c = jnp.einsum("oidx,xqw->iwdoq",
                   weight.astype(jnp.float32), uw_shift)
    c_cat = c.reshape(Cin * W, 3 * cout_wup)

    bias_l = jnp.repeat(bias.astype(jnp.float32), Wup).reshape(1, cout_wup)

    # Lane-friendly input layout: (N, H, Cin*W); all relayout done by XLA in HBM.
    x_r = x.transpose(0, 2, 1, 3).reshape(N, H, Cin * W)

    kernel = _make_kernel(cout_wup)
    out_l = pl.pallas_call(
        kernel,
        out_shape=jax.ShapeDtypeStruct((N, Hup, cout_wup), x.dtype),
        grid=(N,),
        in_specs=[
            pl.BlockSpec((None, H, Cin * W), lambda n: (n, 0, 0)),
            pl.BlockSpec((3, Hup, H), lambda n: (0, 0, 0)),
            pl.BlockSpec((Cin * W, 3 * cout_wup), lambda n: (0, 0)),
            pl.BlockSpec((1, cout_wup), lambda n: (0, 0)),
        ],
        out_specs=pl.BlockSpec((None, Hup, cout_wup), lambda n: (n, 0, 0)),
        compiler_params=pltpu.CompilerParams(dimension_semantics=("parallel",)),
    )(x_r, uh3, c_cat, bias_l)

    # Back to NCHW.
    return out_l.reshape(N, Hup, Cout, Wup).transpose(0, 2, 1, 3)


def upsample_conv_ref(x, weight, bias):
    """Pure-JAX reference (same math) for a correctness check."""
    N, Cin, H, W = x.shape
    Hup, Wup = 2 * H, 2 * W
    uh = jnp.asarray(_bilinear_matrix(H, Hup))
    uw = jnp.asarray(_bilinear_matrix(W, Wup))
    up = jnp.einsum("Hh,nchw,Ww->ncHW", uh, x.astype(jnp.float32), uw)
    out = lax.conv_general_dilated(
        up, weight.astype(jnp.float32),
        window_strides=(1, 1), padding=((1, 1), (1, 1)),
        dimension_numbers=("NCHW", "OIHW", "NCHW"))
    return out + bias.reshape(1, -1, 1, 1)


if __name__ == "__main__":
    key = jax.random.PRNGKey(0)
    kx, kw, kb = jax.random.split(key, 3)
    N, Cin, Cout, H, W = 2, 4, 8, 16, 16

    x = jax.random.normal(kx, (N, Cin, H, W), jnp.float32)
    # Deterministic Conv2d-style init: U(-1/sqrt(fan_in), 1/sqrt(fan_in))
    fan_in = Cin * 3 * 3
    bound = 1.0 / float(np.sqrt(fan_in))
    weight = jax.random.uniform(kw, (Cout, Cin, 3, 3), jnp.float32, -bound, bound)
    bias = jax.random.uniform(kb, (Cout,), jnp.float32, -bound, bound)

    out = jax.block_until_ready(upsample_conv(x, weight, bias))
    ref = upsample_conv_ref(x, weight, bias)
    assert out.shape == (N, Cout, 2 * H, 2 * W)
    np.testing.assert_allclose(np.asarray(out), np.asarray(ref), atol=1e-4, rtol=1e-4)
    print("KERNEL_OK")
</pallas_src>

<mosaic_0001>
module attributes {stable_mosaic.version = 11 : i64} {
  func.func @kernel(%arg0: i32, %arg1: memref<1x16x64xf32, #tpu.memory_space<vmem>>, %arg2: memref<3x32x16xf32, #tpu.memory_space<vmem>>, %arg3: memref<64x768xf32, #tpu.memory_space<vmem>>, %arg4: memref<1x256xf32, #tpu.memory_space<vmem>>, %arg5: memref<1x32x256xf32, #tpu.memory_space<vmem>>) attributes {dimension_semantics = [#tpu.dimension_semantics<parallel>], iteration_bounds = array<i64: 2>, scalar_prefetch = 0 : i64, scratch_operands = 0 : i64, tpu.core_type = #tpu.core_type<tc>, window_params = [{transform_indices = @transform_0, window_bounds = array<i64: 1, 16, 64>}, {pipeline_mode = #tpu.pipeline_mode<synchronous>, transform_indices = @transform_1, window_bounds = array<i64: 3, 32, 16>}, {pipeline_mode = #tpu.pipeline_mode<synchronous>, transform_indices = @transform_2, window_bounds = array<i64: 64, 768>}, {pipeline_mode = #tpu.pipeline_mode<synchronous>, transform_indices = @transform_3, window_bounds = array<i64: 1, 256>}, {transform_indices = @transform_4, window_bounds = array<i64: 1, 32, 256>}]} {
    %c0 = arith.constant 0 : index
    %c0_0 = arith.constant 0 : index
    %c0_1 = arith.constant 0 : index
    %0 = vector.load %arg1[%c0, %c0_0, %c0_1] : memref<1x16x64xf32, #tpu.memory_space<vmem>>, vector<1x16x64xf32>
    %1 = vector.shape_cast %0 : vector<1x16x64xf32> to vector<16x64xf32>
    %c0_2 = arith.constant 0 : index
    %c0_3 = arith.constant 0 : index
    %2 = vector.load %arg3[%c0_2, %c0_3] : memref<64x768xf32, #tpu.memory_space<vmem>>, vector<64x768xf32>
    %cst = arith.constant dense<0.000000e+00> : vector<16x768xf32>
    %3 = tpu.matmul %1, %2, %cst {dimension_numbers = #tpu.dot_dimension_numbers<[1], [0], [0], [1], [0, 0, 1, 1], [], []>} : vector<16x64xf32>, vector<64x768xf32>, vector<16x768xf32> -> vector<16x768xf32>
    %c0_4 = arith.constant 0 : index
    %c0_5 = arith.constant 0 : index
    %c0_6 = arith.constant 0 : index
    %4 = vector.load %arg2[%c0_4, %c0_5, %c0_6] : memref<3x32x16xf32, #tpu.memory_space<vmem>>, vector<1x32x16xf32>
    %5 = vector.shape_cast %4 : vector<1x32x16xf32> to vector<32x16xf32>
    %6 = vector.extract_strided_slice %3 {offsets = [0, 0], sizes = [16, 256], strides = [1, 1]} : vector<16x768xf32> to vector<16x256xf32>
    %cst_7 = arith.constant dense<0.000000e+00> : vector<32x256xf32>
    %7 = tpu.matmul %5, %6, %cst_7 {dimension_numbers = #tpu.dot_dimension_numbers<[1], [0], [0], [1], [0, 0, 1, 1], [], []>} : vector<32x16xf32>, vector<16x256xf32>, vector<32x256xf32> -> vector<32x256xf32>
    %c1 = arith.constant 1 : index
    %c0_8 = arith.constant 0 : index
    %c0_9 = arith.constant 0 : index
    %8 = vector.load %arg2[%c1, %c0_8, %c0_9] : memref<3x32x16xf32, #tpu.memory_space<vmem>>, vector<1x32x16xf32>
    %9 = vector.shape_cast %8 : vector<1x32x16xf32> to vector<32x16xf32>
    %10 = vector.extract_strided_slice %3 {offsets = [0, 256], sizes = [16, 256], strides = [1, 1]} : vector<16x768xf32> to vector<16x256xf32>
    %cst_10 = arith.constant dense<0.000000e+00> : vector<32x256xf32>
    %11 = tpu.matmul %9, %10, %cst_10 {dimension_numbers = #tpu.dot_dimension_numbers<[1], [0], [0], [1], [0, 0, 1, 1], [], []>} : vector<32x16xf32>, vector<16x256xf32>, vector<32x256xf32> -> vector<32x256xf32>
    %12 = arith.addf %7, %11 : vector<32x256xf32>
    %c2 = arith.constant 2 : index
    %c0_11 = arith.constant 0 : index
    %c0_12 = arith.constant 0 : index
    %13 = vector.load %arg2[%c2, %c0_11, %c0_12] : memref<3x32x16xf32, #tpu.memory_space<vmem>>, vector<1x32x16xf32>
    %14 = vector.shape_cast %13 : vector<1x32x16xf32> to vector<32x16xf32>
    %15 = vector.extract_strided_slice %3 {offsets = [0, 512], sizes = [16, 256], strides = [1, 1]} : vector<16x768xf32> to vector<16x256xf32>
    %cst_13 = arith.constant dense<0.000000e+00> : vector<32x256xf32>
    %16 = tpu.matmul %14, %15, %cst_13 {dimension_numbers = #tpu.dot_dimension_numbers<[1], [0], [0], [1], [0, 0, 1, 1], [], []>} : vector<32x16xf32>, vector<16x256xf32>, vector<32x256xf32> -> vector<32x256xf32>
    %17 = arith.addf %12, %16 : vector<32x256xf32>
    %c0_14 = arith.constant 0 : index
    %c0_15 = arith.constant 0 : index
    %18 = vector.load %arg4[%c0_14, %c0_15] : memref<1x256xf32, #tpu.memory_space<vmem>>, vector<1x256xf32>
    %19 = vector.broadcast %18 : vector<1x256xf32> to vector<32x256xf32>
    %20 = arith.addf %17, %19 : vector<32x256xf32>
    %c0_16 = arith.constant 0 : index
    %c0_17 = arith.constant 0 : index
    %c0_18 = arith.constant 0 : index
    %21 = vector.load %arg5[%c0_16, %c0_17, %c0_18] : memref<1x32x256xf32, #tpu.memory_space<vmem>>, vector<1x32x256xf32>
    %22 = vector.shape_cast %21 : vector<1x32x256xf32> to vector<32x256xf32>
    %23 = vector.shape_cast %20 : vector<32x256xf32> to vector<1x32x256xf32>
    tpu.vector_store %arg5[%c0_16, %c0_17, %c0_18], %23 {strides = array<i32>} : memref<1x32x256xf32, #tpu.memory_space<vmem>>, vector<1x32x256xf32>,
    return
  }
  func.func @transform_0(%arg0: i32) -> (i32, i32, i32) {
    %c0_i32 = arith.constant 0 : i32
    %c0_i32_0 = arith.constant 0 : i32
    %c0_i32_1 = arith.constant 0 : i32
    return %arg0, %c0_i32, %c0_i32_0 : i32, i32, i32
  }
  func.func @transform_1(%arg0: i32) -> (i32, i32, i32) {
    %c0_i32 = arith.constant 0 : i32
    %c0_i32_0 = arith.constant 0 : i32
    %c0_i32_1 = arith.constant 0 : i32
    %c0_i32_2 = arith.constant 0 : i32
    return %c0_i32, %c0_i32_0, %c0_i32_1 : i32, i32, i32
  }
  func.func @transform_2(%arg0: i32) -> (i32, i32) {
    %c0_i32 = arith.constant 0 : i32
    %c0_i32_0 = arith.constant 0 : i32
    %c0_i32_1 = arith.constant 0 : i32
    return %c0_i32, %c0_i32_0 : i32, i32
  }
  func.func @transform_3(%arg0: i32) -> (i32, i32) {
    %c0_i32 = arith.constant 0 : i32
    %c0_i32_0 = arith.constant 0 : i32
    %c0_i32_1 = arith.constant 0 : i32
    return %c0_i32, %c0_i32_0 : i32, i32
  }
  func.func @transform_4(%arg0: i32) -> (i32, i32, i32) {
    %c0_i32 = arith.constant 0 : i32
    %c0_i32_0 = arith.constant 0 : i32
    %c0_i32_1 = arith.constant 0 : i32
    return %arg0, %c0_i32, %c0_i32_0 : i32, i32, i32
  }
}

</mosaic_0001>

<llo_original>
// kernel: tpu_custom_call.1
$region0: #{tpu_custom_call.1}
  #allocation0 [shape = 'u32[]', space=smem, size = 0x4, offset = 0x4, fixed_abs, tag = 'smem constant byte address 0x4 - core index']
  #allocation1 [shape = 'u32[144,128]{1,0:T(1,128)}', space=vmem, size = 0x12000, scoped, tag = 'internal scratch']
  %s0 = inlined_call_operand.vmem [shape: f32[2,16,64], index: 0, kind: input, shape index: {}]
  %s1 = inlined_call_operand.vmem [shape: f32[3,32,16], index: 1, kind: input, shape index: {}]
  %s2 = inlined_call_operand.hbm [shape: f32[64,768], index: 2, kind: input, shape index: {}]
  %s3 = inlined_call_operand.vmem [shape: f32[1,256], index: 3, kind: input, shape index: {}]
  %s4 = inlined_call_operand.hbm [shape: f32[2,32,256], index: 4, kind: output, shape index: {}]
  %s5 = sld [smem:[#allocation0]]
  $region53: #{tpu_custom_call.1} parent=0
    _
  %s7 = ssub.s32 1, %s5
  %s8 = scalar_select 0, %s7, %s5
  $region1: #{tpu_custom_call.1} parent=0
    #allocation2 [shape = 'u8[196608]{0}', space=vmem, size = 0x30000, scoped, tag = 'input window, operand 2, single buffered']
    #allocation3 [shape = 's32[2]{0}', space=sflag, size = 0x8, scoped, tag = 'scoped memory for tpu_custom_call.1']
    #allocation4 [shape = 's32[2]{0}', space=sflag, size = 0x8, scoped, tag = 'scoped memory for tpu_custom_call.1']
    #allocation5 [shape = 'u8[65536]{0}', space=vmem, size = 0x10000, scoped, tag = 'output window, operand 0']
    %9 = vsyncpa [#allocation3], 0
    %10 = vsyncpa [#allocation4], 0
    %s11 = scalar_lea.sflag [#allocation4], 1
    %12 = vsyncpa %s11, 0
    loop: start=0, step=1, limit=4
    $region2: #{tpu_custom_call.1} parent=1 // loop_pre_header
      _
    $region3: #{tpu_custom_call.1} parent=1 // loop_header
      %s14 = sphi 0, %s18
      %p15 = scmp.ge.s32.totalorder %s14, 4
      %s24 = sphi 0, %s26
      %s27 = sphi 0, %s24
      %s28 = sphi 0, %s27
      %s44 = sphi 0, %s28
      %s48 = sphi 0, %s48
      %s50 = sphi 0, %s48
      %s51 = sphi 0, %s50
      %s65 = sphi 0, %s51
      %s69 = sphi 0, %s69
      %s71 = sphi 0, %s69
      %s72 = sphi 0, %s71
      %s86 = sphi 0, %s72
      %s90 = sphi 0, %s90
      %s92 = sphi 0, %s90
      %s93 = sphi 0, %s92
      %s107 = sphi 0, %s93
      %s113 = sphi 0, %s115
      %s116 = sphi 0, %s113
      %s117 = sphi 0, %s116
      %s133 = sphi 0, %s117
    $region4: #{tpu_custom_call.1} parent=1 // loop_header_branch
      %17 = sbr.rel (%p15) target = $region8
    $region5: #{tpu_custom_call.1} parent=1 // loop_body
      %s19 = ssub.s32 %s14, 1
      %s20 = ssub.s32 %s14, 2
      %s21 = sadd.s32 %s14, 1
      %s22 = ssub.s32 %s14, %s21
      %p23 = scmp.eq.s32.totalorder %s22, 0
      %s25 = sadd.s32 %s24, 1
      %s26 = scalar_select %p23, %s24, %s25
      %p29 = pneg %p23
      %p30 = scmp.eq.s32.totalorder %s14, 1
      %p31 = por %p29, %p30
      %p32 = scmp.ne.s32.totalorder %s24, %s27
      %p33 = scmp.eq.s32.totalorder %s14, 0
      %p34 = por %p32, %p33
      %p35 = scmp.ne.s32.totalorder %s24, %s27
      %p36 = scmp.eq.s32.totalorder %s19, 1
      %p37 = por %p35, %p36
      %p38 = scmp.ne.s32.totalorder %s27, %s28
      %p39 = scmp.eq.s32.totalorder %s19, 0
      %p40 = por %p38, %p39
      %p41 = scmp.ne.s32.totalorder %s27, %s28
      %p42 = scmp.eq.s32.totalorder %s20, 1
      %p43 = por %p41, %p42
      %p45 = scmp.ne.s32.totalorder %s28, %s44
      %p46 = scmp.eq.s32.totalorder %s20, 0
      %p47 = por %p45, %p46
      %s49 = sadd.s32 %s48, 1
      %p52 = scmp.eq.s32.totalorder %s14, 1
      %p53 = scmp.ne.s32.totalorder %s48, %s50
      %p54 = scmp.eq.s32.totalorder %s14, 0
      %p55 = por %p53, %p54
      %p56 = scmp.ne.s32.totalorder %s48, %s50
      %p57 = scmp.eq.s32.totalorder %s19, 1
      %p58 = por %p56, %p57
      %p59 = scmp.ne.s32.totalorder %s50, %s51
      %p60 = scmp.eq.s32.totalorder %s19, 0
      %p61 = por %p59, %p60
      %p62 = scmp.ne.s32.totalorder %s50, %s51
      %p63 = scmp.eq.s32.totalorder %s20, 1
      %p64 = por %p62, %p63
      %p66 = scmp.ne.s32.totalorder %s51, %s65
      %p67 = scmp.eq.s32.totalorder %s20, 0
      %p68 = por %p66, %p67
      %s70 = sadd.s32 %s69, 1
      %p73 = scmp.eq.s32.totalorder %s14, 1
      %p74 = scmp.ne.s32.totalorder %s69, %s71
      %p75 = scmp.eq.s32.totalorder %s14, 0
      %p76 = por %p74, %p75
      %p77 = scmp.ne.s32.totalorder %s69, %s71
      %p78 = scmp.eq.s32.totalorder %s19, 1
      %p79 = por %p77, %p78
      %p80 = scmp.ne.s32.totalorder %s71, %s72
      %p81 = scmp.eq.s32.totalorder %s19, 0
      %p82 = por %p80, %p81
      %p83 = scmp.ne.s32.totalorder %s71, %s72
      %p84 = scmp.eq.s32.totalorder %s20, 1
      %p85 = por %p83, %p84
      %p87 = scmp.ne.s32.totalorder %s72, %s86
      %p88 = scmp.eq.s32.totalorder %s20, 0
      %p89 = por %p87, %p88
      %s91 = sadd.s32 %s90, 1
      %p94 = scmp.eq.s32.totalorder %s14, 1
      %p95 = scmp.ne.s32.totalorder %s90, %s92
      %p96 = scmp.eq.s32.totalorder %s14, 0
      %p97 = por %p95, %p96
      %p98 = scmp.ne.s32.totalorder %s90, %s92
      %p99 = scmp.eq.s32.totalorder %s19, 1
      %p100 = por %p98, %p99
      %p101 = scmp.ne.s32.totalorder %s92, %s93
      %p102 = scmp.eq.s32.totalorder %s19, 0
      %p103 = por %p101, %p102
      %p104 = scmp.ne.s32.totalorder %s92, %s93
      %p105 = scmp.eq.s32.totalorder %s20, 1
      %p106 = por %p104, %p105
      %p108 = scmp.ne.s32.totalorder %s93, %s107
      %p109 = scmp.eq.s32.totalorder %s20, 0
      %p110 = por %p108, %p109
      %s111 = ssub.s32 %s14, %s21
      %p112 = scmp.eq.s32.totalorder %s111, 0
      %s114 = sadd.s32 %s113, 1
      %s115 = scalar_select %p112, %s113, %s114
      %p118 = pneg %p112
      %p119 = scmp.eq.s32.totalorder %s14, 1
      %p120 = por %p118, %p119
      %p121 = scmp.ne.s32.totalorder %s113, %s116
      %p122 = scmp.eq.s32.totalorder %s14, 0
      %p123 = por %p121, %p122
      %p124 = scmp.ne.s32.totalorder %s113, %s116
      %p125 = scmp.eq.s32.totalorder %s19, 1
      %p126 = por %p124, %p125
      %p127 = scmp.ne.s32.totalorder %s116, %s117
      %p128 = scmp.eq.s32.totalorder %s19, 0
      %p129 = por %p127, %p128
      %p130 = scmp.ne.s32.totalorder %s116, %s117
      %p131 = scmp.eq.s32.totalorder %s20, 1
      %p132 = por %p130, %p131
      %p134 = scmp.ne.s32.totalorder %s117, %s133
      %p135 = scmp.eq.s32.totalorder %s20, 0
      %p136 = por %p134, %p135
      %p137 = scmp.le.s32.totalorder 1, %s14
      %p138 = scmp.lt.s32.totalorder %s14, 3
      %p139 = pnand %p137, %p138
      %p140 = pneg %p139
      // Predicated region
      $region9: #{tpu_custom_call.1} parent=5 // pred_check
        _
      $region10: #{tpu_custom_call.1} parent=5 // pred_check_branch
        %142 = sbr.rel (%p139) target = $region12
      $region11: #{tpu_custom_call.1} parent=5 // pred_region
        %s143 = ssub.s32 %s14, 1
        // Predicated region
        $region13: #{tpu_custom_call.1} parent=11 // pred_check
          %p144 = pneg %p61
        $region14: #{tpu_custom_call.1} parent=11 // pred_check_branch
          %146 = sbr.rel (%p144) target = $region16
        $region15: #{tpu_custom_call.1} parent=11 // pred_region
          _
        $region16: #{tpu_custom_call.1} parent=11 // pred_fallthru
          _
        // Predicated region
        $region17: #{tpu_custom_call.1} parent=11 // pred_check
          %p147 = pneg %p82
        $region18: #{tpu_custom_call.1} parent=11 // pred_check_branch
          %149 = sbr.rel (%p147) target = $region20
        $region19: #{tpu_custom_call.1} parent=11 // pred_region
          %s151 = ssub.s32 6144, 6144
          %152 = vsyncadd [#allocation3], %s151
          %s153 = sshll.u32 [#allocation2], 4
          %s154 = int_to_ptr.vmem [resolvable:$true] %s153
          %159 = dma.hbm_to_vmem [thread:$0]  %s2, 6144, %s154, [#allocation3], 768, 768, 48
        $region20: #{tpu_custom_call.1} parent=11 // pred_fallthru
          _
        // Predicated region
        $region21: #{tpu_custom_call.1} parent=11 // pred_check
          %p160 = pneg %p103
        $region22: #{tpu_custom_call.1} parent=11 // pred_check_branch
          %162 = sbr.rel (%p160) target = $region24
        $region23: #{tpu_custom_call.1} parent=11 // pred_region
          _
        $region24: #{tpu_custom_call.1} parent=11 // pred_fallthru
          _
      $region12: #{tpu_custom_call.1} parent=5 // pred_fallthru
        _
      %p163 = scmp.lt.s32.totalorder %s14, 2
      // Predicated region
      $region25: #{tpu_custom_call.1} parent=5 // pred_check
        %p164 = pneg %p163
      $region26: #{tpu_custom_call.1} parent=5 // pred_check_branch
        %166 = sbr.rel (%p164) target = $region28
      $region27: #{tpu_custom_call.1} parent=5 // pred_region
        // Predicated region
        $region29: #{tpu_custom_call.1} parent=27 // pred_check
          %p167 = pneg %p34
        $region30: #{tpu_custom_call.1} parent=27 // pred_check_branch
          %169 = sbr.rel (%p167) target = $region32
        $region31: #{tpu_custom_call.1} parent=27 // pred_region
          %p170 = scmp.lt.s32.totalorder %s14, 1
          %s171 = scalar_select %p170, %s14, 1
          %s172 = smul.addr %s171, 2
          %s173 = smul.addr %s172, 8
          %s174 = scalar_lea.vmem %s0, %s173
        $region32: #{tpu_custom_call.1} parent=27 // pred_fallthru
          _
      $region28: #{tpu_custom_call.1} parent=5 // pred_fallthru
        _
      %p175 = scmp.le.s32.totalorder 1, %s14
      %p176 = scmp.lt.s32.totalorder %s14, 3
      %p177 = pnand %p175, %p176
      %p178 = pneg %p177
      // Predicated region
      $region33: #{tpu_custom_call.1} parent=5 // pred_check
        _
      $region34: #{tpu_custom_call.1} parent=5 // pred_check_branch
        %180 = sbr.rel (%p177) target = $region36
      $region35: #{tpu_custom_call.1} parent=5 // pred_region
        %s181 = ssub.s32 %s14, 1
        // Predicated region
        $region37: #{tpu_custom_call.1} parent=35 // pred_check
          %p182 = pneg %p82
        $region38: #{tpu_custom_call.1} parent=35 // pred_check_branch
          %184 = sbr.rel (%p182) target = $region40
        $region39: #{tpu_custom_call.1} parent=35 // pred_region
          %185 = dma.done [#allocation3], 6144
        $region40: #{tpu_custom_call.1} parent=35 // pred_fallthru
          _
        %p186 = scmp.lt.s32.totalorder %s19, 1
        %s187 = scalar_select %p186, %s19, 1
        %s188 = smul.addr %s187, 2
        %s189 = smul.addr %s188, 8
        %s190 = scalar_lea.vmem %s0, %s189
        %p191 = pneg %p40
        %p192 = pneg %p37
        %p193 = pneg %p61
        %p194 = pneg %p58
        %p195 = pneg %p82
        %p196 = pneg %p79
        %p197 = pneg %p103
        %p198 = pneg %p100
        %p199 = pneg %p129
        %p200 = pneg %p126
        %s201 = sand.u32 %s116, 1
        %s202 = scalar_lea.sflag [#allocation4], %s201
        %s203 = sand.u32 %s116, 1
        %s204 = smul.addr %s203, 64
        %s205 = scalar_lea.vmem [#allocation5], %s204
        %p206 = scmp.lt.s32.totalorder %s19, 1
        %s207 = scalar_select %p206, %s19, 1
        %s208 = smul.addr %s207, 2
        %s209 = smul.addr %s208, 8
        %s210 = scalar_lea.vmem %s0, %s209
        %v211 = vld [vmem:[%s210] sm:$0xff]
        %v212 = vld [vmem:[%s210 + $0x8] sm:$0xff]
        %v213 = vld [vmem:[#allocation2] sm:$0xff]
        %v214 = vld [vmem:[#allocation2 + $0x8] sm:$0xff]
        %v215 = vld [vmem:[#allocation2 + $0x10] sm:$0xff]
        %v216 = vld [vmem:[#allocation2 + $0x18] sm:$0xff]
        %v217 = vld [vmem:[#allocation2 + $0x20] sm:$0xff]
        %v218 = vld [vmem:[#allocation2 + $0x28] sm:$0xff]
        %v219 = vld [vmem:[#allocation2 + $0x30] sm:$0xff]
        %v220 = vld [vmem:[#allocation2 + $0x38] sm:$0xff]
        %v221 = vld [vmem:[#allocation2 + $0x40] sm:$0xff]
        %v222 = vld [vmem:[#allocation2 + $0x48] sm:$0xff]
        %v223 = vld [vmem:[#allocation2 + $0x50] sm:$0xff]
        %v224 = vld [vmem:[#allocation2 + $0x58] sm:$0xff]
        %v225 = vld [vmem:[#allocation2 + $0x60] sm:$0xff]
        %v226 = vld [vmem:[#allocation2 + $0x68] sm:$0xff]
        %v227 = vld [vmem:[#allocation2 + $0x70] sm:$0xff]
        %v228 = vld [vmem:[#allocation2 + $0x78] sm:$0xff]
        %v229 = vld [vmem:[#allocation2 + $0x80] sm:$0xff]
        %v230 = vld [vmem:[#allocation2 + $0x88] sm:$0xff]
        %v231 = vld [vmem:[#allocation2 + $0x90] sm:$0xff]
        %v232 = vld [vmem:[#allocation2 + $0x98] sm:$0xff]
        %v233 = vld [vmem:[#allocation2 + $0xa0] sm:$0xff]
        %v234 = vld [vmem:[#allocation2 + $0xa8] sm:$0xff]
        %v235 = vld [vmem:[#allocation2 + $0xb0] sm:$0xff]
        %v236 = vld [vmem:[#allocation2 + $0xb8] sm:$0xff]
        %v237 = vld [vmem:[#allocation2 + $0xc0] sm:$0xff]
        %v238 = vld [vmem:[#allocation2 + $0xc8] sm:$0xff]
        %v239 = vld [vmem:[#allocation2 + $0xd0] sm:$0xff]
        %v240 = vld [vmem:[#allocation2 + $0xd8] sm:$0xff]
        %v241 = vld [vmem:[#allocation2 + $0xe0] sm:$0xff]
        %v242 = vld [vmem:[#allocation2 + $0xe8] sm:$0xff]
        %v243 = vld [vmem:[#allocation2 + $0xf0] sm:$0xff]
        %v244 = vld [vmem:[#allocation2 + $0xf8] sm:$0xff]
        %v245 = vld [vmem:[#allocation2 + $0x100] sm:$0xff]
        %v246 = vld [vmem:[#allocation2 + $0x108] sm:$0xff]
        %v247 = vld [vmem:[#allocation2 + $0x110] sm:$0xff]
        %v248 = vld [vmem:[#allocation2 + $0x118] sm:$0xff]
        %v249 = vld [vmem:[#allocation2 + $0x120] sm:$0xff]
        %v250 = vld [vmem:[#allocation2 + $0x128] sm:$0xff]
        %v251 = vld [vmem:[#allocation2 + $0x130] sm:$0xff]
        %v252 = vld [vmem:[#allocation2 + $0x138] sm:$0xff]
        %v253 = vld [vmem:[#allocation2 + $0x140] sm:$0xff]
        %v254 = vld [vmem:[#allocation2 + $0x148] sm:$0xff]
        %v255 = vld [vmem:[#allocation2 + $0x150] sm:$0xff]
        %v256 = vld [vmem:[#allocation2 + $0x158] sm:$0xff]
        %v257 = vld [vmem:[#allocation2 + $0x160] sm:$0xff]
        %v258 = vld [vmem:[#allocation2 + $0x168] sm:$0xff]
        %v259 = vld [vmem:[#allocation2 + $0x170] sm:$0xff]
        %v260 = vld [vmem:[#allocation2 + $0x178] sm:$0xff]
        %vm261 = vcmask 523264
        %v263 = vsel %vm261, %v211, 0
        %v266 = vsel %vm261, %v212, 0
        %268 = vmatprep.subr.mxu0 0.0
        %269 = vmatpush1.msra.mxu0 0.0
        %270 = vmatprep.subr.mxu0 0.0
        %271 = vmatpush1.msra.mxu0 0.0
        %272 = vmatprep.subr.mxu0 0.0
        %273 = vmatpush1.msra.mxu0 0.0
        %274 = vmatprep.subr.mxu0 0.0
        %275 = vmatpush1.msra.mxu0 0.0
        %276 = vmatprep.subr.mxu0 0.0
        %277 = vmatpush1.msra.mxu0 0.0
        %278 = vmatprep.subr.mxu0 0.0
        %279 = vmatpush1.msra.mxu0 0.0
        %280 = vmatprep.subr.mxu0 0.0
        %281 = vmatpush1.msra.mxu0 0.0
        %282 = vmatprep.subr.mxu0 0.0
        %283 = vmatpush1.msra.mxu0 0.0
        %284 = vmatprep.subr.mxu0 %v256
        %285 = vmatpush1.msra.mxu0 %v255
        %286 = vmatprep.subr.mxu0 %v250
        %287 = vmatpush1.msra.mxu0 %v249
        %288 = vmatprep.subr.mxu0 %v244
        %289 = vmatpush1.msra.mxu0 %v243
        %290 = vmatprep.subr.mxu0 %v238
        %291 = vmatpush1.msra.mxu0 %v237
        %292 = vmatprep.subr.mxu0 %v232
        %293 = vmatpush1.msra.mxu0 %v231
        %294 = vmatprep.subr.mxu0 %v226
        %295 = vmatpush1.msra.mxu0 %v225
        %296 = vmatprep.subr.mxu0 %v220
        %297 = vmatpush1.msra.mxu0 %v219
        %298 = vmatprep.subr.mxu0 %v214
        %299 = vmatpush1.msra.mxu0 %v213
        %300 = vmatprep.subr.mxu0 0.0
        %301 = vmatpush2.msra.mxu0 0.0
        %302 = vmatprep.subr.mxu0 0.0
        %303 = vmatpush2.msra.mxu0 0.0
        %304 = vmatprep.subr.mxu0 0.0
        %305 = vmatpush2.msra.mxu0 0.0
        %306 = vmatprep.subr.mxu0 0.0
        %307 = vmatpush2.msra.mxu0 0.0
        %308 = vmatprep.subr.mxu0 0.0
        %309 = vmatpush2.msra.mxu0 0.0
        %310 = vmatprep.subr.mxu0 0.0
        %311 = vmatpush2.msra.mxu0 0.0
        %312 = vmatprep.subr.mxu0 0.0
        %313 = vmatpush2.msra.mxu0 0.0
        %314 = vmatprep.subr.mxu0 0.0
        %315 = vmatpush2.msra.mxu0 0.0
        %316 = vmatprep.subr.mxu0 0.0
        %317 = vmatpush2.msra.mxu0 0.0
        %318 = vmatprep.subr.mxu0 0.0
        %319 = vmatpush2.msra.mxu0 0.0
        %320 = vmatprep.subr.mxu0 0.0
        %321 = vmatpush2.msra.mxu0 0.0
        %322 = vmatprep.subr.mxu0 0.0
        %323 = vmatpush2.msra.mxu0 0.0
        %324 = vmatprep.subr.mxu0 0.0
        %325 = vmatpush2.msra.mxu0 0.0
        %326 = vmatprep.subr.mxu0 0.0
        %327 = vmatpush2.msra.mxu0 0.0
        %328 = vmatprep.subr.mxu0 0.0
        %329 = vmatpush2.msra.mxu0 0.0
        %330 = vmatprep.subr.mxu0 0.0
        %331 = vmatpush2.msra.mxu0 0.0
        %332 = vmatprep.mubr.f32.mxu0 0.0
        %333 = vmatmul.mubr.f32.gmra.mxu0 %v263
        %v334 = vpop.f32.mrf.mxu0
        %v335 = vadd.f32 0.0, %v334
        %v336 = vpop.f32.mrf.mxu0
        %v337 = vadd.f32 0.0, %v336
        %338 = vmatprep.mubr.f32.mxu0 0.0
        %339 = vmatmul.mubr.f32.gmra.mxu0 %v266
        %v340 = vpop.f32.mrf.mxu0
        %v341 = vadd.f32 0.0, %v340
        %v342 = vpop.f32.mrf.mxu0
        %v343 = vadd.f32 0.0, %v342
        %344 = vdwg.mxu0
        %345 = vmatprep.subr.mxu0 0.0
        %346 = vmatpush1.msra.mxu0 0.0
        %347 = vmatprep.subr.mxu0 0.0
        %348 = vmatpush1.msra.mxu0 0.0
        %349 = vmatprep.subr.mxu0 0.0
        %350 = vmatpush1.msra.mxu0 0.0
        %351 = vmatprep.subr.mxu0 0.0
        %352 = vmatpush1.msra.mxu0 0.0
        %353 = vmatprep.subr.mxu0 0.0
        %354 = vmatpush1.msra.mxu0 0.0
        %355 = vmatprep.subr.mxu0 0.0
        %356 = vmatpush1.msra.mxu0 0.0
        %357 = vmatprep.subr.mxu0 0.0
        %358 = vmatpush1.msra.mxu0 0.0
        %359 = vmatprep.subr.mxu0 0.0
        %360 = vmatpush1.msra.mxu0 0.0
        %361 = vmatprep.subr.mxu0 %v258
        %362 = vmatpush1.msra.mxu0 %v257
        %363 = vmatprep.subr.mxu0 %v252
        %364 = vmatpush1.msra.mxu0 %v251
        %365 = vmatprep.subr.mxu0 %v246
        %366 = vmatpush1.msra.mxu0 %v245
        %367 = vmatprep.subr.mxu0 %v240
        %368 = vmatpush1.msra.mxu0 %v239
        %369 = vmatprep.subr.mxu0 %v234
        %370 = vmatpush1.msra.mxu0 %v233
        %371 = vmatprep.subr.mxu0 %v228
        %372 = vmatpush1.msra.mxu0 %v227
        %373 = vmatprep.subr.mxu0 %v222
        %374 = vmatpush1.msra.mxu0 %v221
        %375 = vmatprep.subr.mxu0 %v216
        %376 = vmatpush1.msra.mxu0 %v215
        %377 = vmatprep.subr.mxu0 0.0
        %378 = vmatpush2.msra.mxu0 0.0
        %379 = vmatprep.subr.mxu0 0.0
        %380 = vmatpush2.msra.mxu0 0.0
        %381 = vmatprep.subr.mxu0 0.0
        %382 = vmatpush2.msra.mxu0 0.0
        %383 = vmatprep.subr.mxu0 0.0
        %384 = vmatpush2.msra.mxu0 0.0
        %385 = vmatprep.subr.mxu0 0.0
        %386 = vmatpush2.msra.mxu0 0.0
        %387 = vmatprep.subr.mxu0 0.0
        %388 = vmatpush2.msra.mxu0 0.0
        %389 = vmatprep.subr.mxu0 0.0
        %390 = vmatpush2.msra.mxu0 0.0
        %391 = vmatprep.subr.mxu0 0.0
        %392 = vmatpush2.msra.mxu0 0.0
        %393 = vmatprep.subr.mxu0 0.0
        %394 = vmatpush2.msra.mxu0 0.0
        %395 = vmatprep.subr.mxu0 0.0
        %396 = vmatpush2.msra.mxu0 0.0
        %397 = vmatprep.subr.mxu0 0.0
        %398 = vmatpush2.msra.mxu0 0.0
        %399 = vmatprep.subr.mxu0 0.0
        %400 = vmatpush2.msra.mxu0 0.0
        %401 = vmatprep.subr.mxu0 0.0
        %402 = vmatpush2.msra.mxu0 0.0
        %403 = vmatprep.subr.mxu0 0.0
        %404 = vmatpush2.msra.mxu0 0.0
        %405 = vmatprep.subr.mxu0 0.0
        %406 = vmatpush2.msra.mxu0 0.0
        %407 = vmatprep.subr.mxu0 0.0
        %408 = vmatpush2.msra.mxu0 0.0
        %409 = vmatprep.mubr.f32.mxu0 0.0
        %410 = vmatmul.mubr.f32.gmra.mxu0 %v263
        %v411 = vpop.f32.mrf.mxu0
        %v412 = vadd.f32 0.0, %v411
        %v413 = vpop.f32.mrf.mxu0
        %v414 = vadd.f32 0.0, %v413
        %415 = vmatprep.mubr.f32.mxu0 0.0
        %416 = vmatmul.mubr.f32.gmra.mxu0 %v266
        %v417 = vpop.f32.mrf.mxu0
        %v418 = vadd.f32 0.0, %v417
        %v419 = vpop.f32.mrf.mxu0
        %v420 = vadd.f32 0.0, %v419
        %421 = vdwg.mxu0
        %422 = vmatprep.subr.mxu0 0.0
        %423 = vmatpush1.msra.mxu0 0.0
        %424 = vmatprep.subr.mxu0 0.0
        %425 = vmatpush1.msra.mxu0 0.0
        %426 = vmatprep.subr.mxu0 0.0
        %427 = vmatpush1.msra.mxu0 0.0
        %428 = vmatprep.subr.mxu0 0.0
        %429 = vmatpush1.msra.mxu0 0.0
        %430 = vmatprep.subr.mxu0 0.0
        %431 = vmatpush1.msra.mxu0 0.0
        %432 = vmatprep.subr.mxu0 0.0
        %433 = vmatpush1.msra.mxu0 0.0
        %434 = vmatprep.subr.mxu0 0.0
        %435 = vmatpush1.msra.mxu0 0.0
        %436 = vmatprep.subr.mxu0 0.0
        %437 = vmatpush1.msra.mxu0 0.0
        %438 = vmatprep.subr.mxu0 %v260
        %439 = vmatpush1.msra.mxu0 %v259
        %440 = vmatprep.subr.mxu0 %v254
        %441 = vmatpush1.msra.mxu0 %v253
        %442 = vmatprep.subr.mxu0 %v248
        %443 = vmatpush1.msra.mxu0 %v247
        %444 = vmatprep.subr.mxu0 %v242
        %445 = vmatpush1.msra.mxu0 %v241
        %446 = vmatprep.subr.mxu0 %v236
        %447 = vmatpush1.msra.mxu0 %v235
        %448 = vmatprep.subr.mxu0 %v230
        %449 = vmatpush1.msra.mxu0 %v229
        %450 = vmatprep.subr.mxu0 %v224
        %451 = vmatpush1.msra.mxu0 %v223
        %452 = vmatprep.subr.mxu0 %v218
        %453 = vmatpush1.msra.mxu0 %v217
        %454 = vmatprep.subr.mxu0 0.0
        %455 = vmatpush2.msra.mxu0 0.0
        %456 = vmatprep.subr.mxu0 0.0
        %457 = vmatpush2.msra.mxu0 0.0
        %458 = vmatprep.subr.mxu0 0.0
        %459 = vmatpush2.msra.mxu0 0.0
        %460 = vmatprep.subr.mxu0 0.0
        %461 = vmatpush2.msra.mxu0 0.0
        %462 = vmatprep.subr.mxu0 0.0
        %463 = vmatpush2.msra.mxu0 0.0
        %464 = vmatprep.subr.mxu0 0.0
        %465 = vmatpush2.msra.mxu0 0.0
        %466 = vmatprep.subr.mxu0 0.0
        %467 = vmatpush2.msra.mxu0 0.0
        %468 = vmatprep.subr.mxu0 0.0
        %469 = vmatpush2.msra.mxu0 0.0
        %470 = vmatprep.subr.mxu0 0.0
        %471 = vmatpush2.msra.mxu0 0.0
        %472 = vmatprep.subr.mxu0 0.0
        %473 = vmatpush2.msra.mxu0 0.0
        %474 = vmatprep.subr.mxu0 0.0
        %475 = vmatpush2.msra.mxu0 0.0
        %476 = vmatprep.subr.mxu0 0.0
        %477 = vmatpush2.msra.mxu0 0.0
        %478 = vmatprep.subr.mxu0 0.0
        %479 = vmatpush2.msra.mxu0 0.0
        %480 = vmatprep.subr.mxu0 0.0
        %481 = vmatpush2.msra.mxu0 0.0
        %482 = vmatprep.subr.mxu0 0.0
        %483 = vmatpush2.msra.mxu0 0.0
        %484 = vmatprep.subr.mxu0 0.0
        %485 = vmatpush2.msra.mxu0 0.0
        %486 = vmatprep.mubr.f32.mxu0 0.0
        %487 = vmatmul.mubr.f32.gmra.mxu0 %v263
        %v488 = vpop.f32.mrf.mxu0
        %v489 = vadd.f32 0.0, %v488
        %v490 = vpop.f32.mrf.mxu0
        %v491 = vadd.f32 0.0, %v490
        %492 = vmatprep.mubr.f32.mxu0 0.0
        %493 = vmatmul.mubr.f32.gmra.mxu0 %v266
        %v494 = vpop.f32.mrf.mxu0
        %v495 = vadd.f32 0.0, %v494
        %v496 = vpop.f32.mrf.mxu0
        %v497 = vadd.f32 0.0, %v496
        %498 = vdwg.mxu0
        %v499 = vld [vmem:[%s1] sm:$0xff]
        %v500 = vld [vmem:[%s1 + $0x8] sm:$0xff]
        %v501 = vld [vmem:[%s1 + $0x10] sm:$0xff]
        %v502 = vld [vmem:[%s1 + $0x18] sm:$0xff]
        %s503 = scalar_lea.vmem %s1, 32
        %v504 = vld [vmem:[%s503] sm:$0xff]
        %v505 = vld [vmem:[%s503 + $0x8] sm:$0xff]
        %v506 = vld [vmem:[%s503 + $0x10] sm:$0xff]
        %v507 = vld [vmem:[%s503 + $0x18] sm:$0xff]
        %vm508 = vcmask 130048
        %v510 = vsel %vm508, %v504, 0
        %v513 = vsel %vm508, %v505, 0
        %v516 = vsel %vm508, %v506, 0
        %v519 = vsel %vm508, %v507, 0
        %521 = vmatprep.subr.mxu0 0.0
        %522 = vmatpush1.msra.mxu0 0.0
        %523 = vmatprep.subr.mxu0 0.0
        %524 = vmatpush1.msra.mxu0 0.0
        %525 = vmatprep.subr.mxu0 0.0
        %526 = vmatpush1.msra.mxu0 0.0
        %527 = vmatprep.subr.mxu0 0.0
        %528 = vmatpush1.msra.mxu0 0.0
        %529 = vmatprep.subr.mxu0 0.0
        %530 = vmatpush1.msra.mxu0 0.0
        %531 = vmatprep.subr.mxu0 0.0
        %532 = vmatpush1.msra.mxu0 0.0
        %533 = vmatprep.subr.mxu0 0.0
        %534 = vmatpush1.msra.mxu0 0.0
        %535 = vmatprep.subr.mxu0 0.0
        %536 = vmatpush1.msra.mxu0 0.0
        %537 = vmatprep.subr.mxu0 0.0
        %538 = vmatpush1.msra.mxu0 0.0
        %539 = vmatprep.subr.mxu0 0.0
        %540 = vmatpush1.msra.mxu0 0.0
        %541 = vmatprep.subr.mxu0 0.0
        %542 = vmatpush1.msra.mxu0 0.0
        %543 = vmatprep.subr.mxu0 0.0
        %544 = vmatpush1.msra.mxu0 0.0
        %545 = vmatprep.subr.mxu0 0.0
        %546 = vmatpush1.msra.mxu0 0.0
        %547 = vmatprep.subr.mxu0 0.0
        %548 = vmatpush1.msra.mxu0 0.0
        %549 = vmatprep.subr.mxu0 %v420
        %550 = vmatpush1.msra.mxu0 %v418
        %551 = vmatprep.subr.mxu0 %v414
        %552 = vmatpush1.msra.mxu0 %v412
        %553 = vmatprep.subr.mxu0 0.0
        %554 = vmatpush2.msra.mxu0 0.0
        %555 = vmatprep.subr.mxu0 0.0
        %556 = vmatpush2.msra.mxu0 0.0
        %557 = vmatprep.subr.mxu0 0.0
        %558 = vmatpush2.msra.mxu0 0.0
        %559 = vmatprep.subr.mxu0 0.0
        %560 = vmatpush2.msra.mxu0 0.0
        %561 = vmatprep.subr.mxu0 0.0
        %562 = vmatpush2.msra.mxu0 0.0
        %563 = vmatprep.subr.mxu0 0.0
        %564 = vmatpush2.msra.mxu0 0.0
        %565 = vmatprep.subr.mxu0 0.0
        %566 = vmatpush2.msra.mxu0 0.0
        %567 = vmatprep.subr.mxu0 0.0
        %568 = vmatpush2.msra.mxu0 0.0
        %569 = vmatprep.subr.mxu0 0.0
        %570 = vmatpush2.msra.mxu0 0.0
        %571 = vmatprep.subr.mxu0 0.0
        %572 = vmatpush2.msra.mxu0 0.0
        %573 = vmatprep.subr.mxu0 0.0
        %574 = vmatpush2.msra.mxu0 0.0
        %575 = vmatprep.subr.mxu0 0.0
        %576 = vmatpush2.msra.mxu0 0.0
        %577 = vmatprep.subr.mxu0 0.0
        %578 = vmatpush2.msra.mxu0 0.0
        %579 = vmatprep.subr.mxu0 0.0
        %580 = vmatpush2.msra.mxu0 0.0
        %581 = vmatprep.subr.mxu0 0.0
        %582 = vmatpush2.msra.mxu0 0.0
        %583 = vmatprep.subr.mxu0 0.0
        %584 = vmatpush2.msra.mxu0 0.0
        %585 = vmatprep.mubr.f32.mxu0 0.0
        %586 = vmatmul.mubr.f32.gmra.mxu0 %v510
        %v587 = vpop.f32.mrf.mxu0
        %v588 = vadd.f32 0.0, %v587
        %v589 = vpop.f32.mrf.mxu0
        %v590 = vadd.f32 0.0, %v589
        %591 = vmatprep.mubr.f32.mxu0 0.0
        %592 = vmatmul.mubr.f32.gmra.mxu0 %v513
        %v593 = vpop.f32.mrf.mxu0
        %v594 = vadd.f32 0.0, %v593
        %v595 = vpop.f32.mrf.mxu0
        %v596 = vadd.f32 0.0, %v595
        %597 = vmatprep.mubr.f32.mxu0 0.0
        %598 = vmatmul.mubr.f32.gmra.mxu0 %v516
        %v599 = vpop.f32.mrf.mxu0
        %v600 = vadd.f32 0.0, %v599
        %v601 = vpop.f32.mrf.mxu0
        %v602 = vadd.f32 0.0, %v601
        %603 = vmatprep.mubr.f32.mxu0 0.0
        %604 = vmatmul.mubr.f32.gmra.mxu0 %v519
        %v605 = vpop.f32.mrf.mxu0
        %v606 = vadd.f32 0.0, %v605
        %v607 = vpop.f32.mrf.mxu0
        %v608 = vadd.f32 0.0, %v607
        %609 = vdwg.mxu0
        %v611 = vsel %vm508, %v499, 0
        %v614 = vsel %vm508, %v500, 0
        %v617 = vsel %vm508, %v501, 0
        %v620 = vsel %vm508, %v502, 0
        %622 = vmatprep.subr.mxu0 0.0
        %623 = vmatpush1.msra.mxu0 0.0
        %624 = vmatprep.subr.mxu0 0.0
        %625 = vmatpush1.msra.mxu0 0.0
        %626 = vmatprep.subr.mxu0 0.0
        %627 = vmatpush1.msra.mxu0 0.0
        %628 = vmatprep.subr.mxu0 0.0
        %629 = vmatpush1.msra.mxu0 0.0
        %630 = vmatprep.subr.mxu0 0.0
        %631 = vmatpush1.msra.mxu0 0.0
        %632 = vmatprep.subr.mxu0 0.0
        %633 = vmatpush1.msra.mxu0 0.0
        %634 = vmatprep.subr.mxu0 0.0
        %635 = vmatpush1.msra.mxu0 0.0
        %636 = vmatprep.subr.mxu0 0.0
        %637 = vmatpush1.msra.mxu0 0.0
        %638 = vmatprep.subr.mxu0 0.0
        %639 = vmatpush1.msra.mxu0 0.0
        %640 = vmatprep.subr.mxu0 0.0
        %641 = vmatpush1.msra.mxu0 0.0
        %642 = vmatprep.subr.mxu0 0.0
        %643 = vmatpush1.msra.mxu0 0.0
        %644 = vmatprep.subr.mxu0 0.0
        %645 = vmatpush1.msra.mxu0 0.0
        %646 = vmatprep.subr.mxu0 0.0
        %647 = vmatpush1.msra.mxu0 0.0
        %648 = vmatprep.subr.mxu0 0.0
        %649 = vmatpush1.msra.mxu0 0.0
        %650 = vmatprep.subr.mxu0 %v343
        %651 = vmatpush1.msra.mxu0 %v341
        %652 = vmatprep.subr.mxu0 %v337
        %653 = vmatpush1.msra.mxu0 %v335
        %654 = vmatprep.subr.mxu0 0.0
        %655 = vmatpush2.msra.mxu0 0.0
        %656 = vmatprep.subr.mxu0 0.0
        %657 = vmatpush2.msra.mxu0 0.0
        %658 = vmatprep.subr.mxu0 0.0
        %659 = vmatpush2.msra.mxu0 0.0
        %660 = vmatprep.subr.mxu0 0.0
        %661 = vmatpush2.msra.mxu0 0.0
        %662 = vmatprep.subr.mxu0 0.0
        %663 = vmatpush2.msra.mxu0 0.0
        %664 = vmatprep.subr.mxu0 0.0
        %665 = vmatpush2.msra.mxu0 0.0
        %666 = vmatprep.subr.mxu0 0.0
        %667 = vmatpush2.msra.mxu0 0.0
        %668 = vmatprep.subr.mxu0 0.0
        %669 = vmatpush2.msra.mxu0 0.0
        %670 = vmatprep.subr.mxu0 0.0
        %671 = vmatpush2.msra.mxu0 0.0
        %672 = vmatprep.subr.mxu0 0.0
        %673 = vmatpush2.msra.mxu0 0.0
        %674 = vmatprep.subr.mxu0 0.0
        %675 = vmatpush2.msra.mxu0 0.0
        %676 = vmatprep.subr.mxu0 0.0
        %677 = vmatpush2.msra.mxu0 0.0
        %678 = vmatprep.subr.mxu0 0.0
        %679 = vmatpush2.msra.mxu0 0.0
        %680 = vmatprep.subr.mxu0 0.0
        %681 = vmatpush2.msra.mxu0 0.0
        %682 = vmatprep.subr.mxu0 0.0
        %683 = vmatpush2.msra.mxu0 0.0
        %684 = vmatprep.subr.mxu0 0.0
        %685 = vmatpush2.msra.mxu0 0.0
        %686 = vmatprep.mubr.f32.mxu0 0.0
        %687 = vmatmul.mubr.f32.gmra.mxu0 %v611
        %v688 = vpop.f32.mrf.mxu0
        %v689 = vadd.f32 %v588, %v688
        %v690 = vpop.f32.mrf.mxu0
        %v691 = vadd.f32 %v590, %v690
        %692 = vmatprep.mubr.f32.mxu0 0.0
        %693 = vmatmul.mubr.f32.gmra.mxu0 %v614
        %v694 = vpop.f32.mrf.mxu0
        %v695 = vadd.f32 %v594, %v694
        %v696 = vpop.f32.mrf.mxu0
        %v697 = vadd.f32 %v596, %v696
        %698 = vmatprep.mubr.f32.mxu0 0.0
        %699 = vmatmul.mubr.f32.gmra.mxu0 %v617
        %v700 = vpop.f32.mrf.mxu0
        %v701 = vadd.f32 %v600, %v700
        %v702 = vpop.f32.mrf.mxu0
        %v703 = vadd.f32 %v602, %v702
        %704 = vmatprep.mubr.f32.mxu0 0.0
        %705 = vmatmul.mubr.f32.gmra.mxu0 %v620
        %v706 = vpop.f32.mrf.mxu0
        %v707 = vadd.f32 %v606, %v706
        %v708 = vpop.f32.mrf.mxu0
        %v709 = vadd.f32 %v608, %v708
        %710 = vdwg.mxu0
        %s711 = scalar_lea.vmem %s1, 64
        %v712 = vld [vmem:[%s711] sm:$0xff]
        %v713 = vld [vmem:[%s711 + $0x8] sm:$0xff]
        %v714 = vld [vmem:[%s711 + $0x10] sm:$0xff]
        %v715 = vld [vmem:[%s711 + $0x18] sm:$0xff]
        %v717 = vsel %vm508, %v712, 0
        %v720 = vsel %vm508, %v713, 0
        %v723 = vsel %vm508, %v714, 0
        %v726 = vsel %vm508, %v715, 0
        %728 = vmatprep.subr.mxu0 0.0
        %729 = vmatpush1.msra.mxu0 0.0
        %730 = vmatprep.subr.mxu0 0.0
        %731 = vmatpush1.msra.mxu0 0.0
        %732 = vmatprep.subr.mxu0 0.0
        %733 = vmatpush1.msra.mxu0 0.0
        %734 = vmatprep.subr.mxu0 0.0
        %735 = vmatpush1.msra.mxu0 0.0
        %736 = vmatprep.subr.mxu0 0.0
        %737 = vmatpush1.msra.mxu0 0.0
        %738 = vmatprep.subr.mxu0 0.0
        %739 = vmatpush1.msra.mxu0 0.0
        %740 = vmatprep.subr.mxu0 0.0
        %741 = vmatpush1.msra.mxu0 0.0
        %742 = vmatprep.subr.mxu0 0.0
        %743 = vmatpush1.msra.mxu0 0.0
        %744 = vmatprep.subr.mxu0 0.0
        %745 = vmatpush1.msra.mxu0 0.0
        %746 = vmatprep.subr.mxu0 0.0
        %747 = vmatpush1.msra.mxu0 0.0
        %748 = vmatprep.subr.mxu0 0.0
        %749 = vmatpush1.msra.mxu0 0.0
        %750 = vmatprep.subr.mxu0 0.0
        %751 = vmatpush1.msra.mxu0 0.0
        %752 = vmatprep.subr.mxu0 0.0
        %753 = vmatpush1.msra.mxu0 0.0
        %754 = vmatprep.subr.mxu0 0.0
        %755 = vmatpush1.msra.mxu0 0.0
        %756 = vmatprep.subr.mxu0 %v497
        %757 = vmatpush1.msra.mxu0 %v495
        %758 = vmatprep.subr.mxu0 %v491
        %759 = vmatpush1.msra.mxu0 %v489
        %760 = vmatprep.subr.mxu0 0.0
        %761 = vmatpush2.msra.mxu0 0.0
        %762 = vmatprep.subr.mxu0 0.0
        %763 = vmatpush2.msra.mxu0 0.0
        %764 = vmatprep.subr.mxu0 0.0
        %765 = vmatpush2.msra.mxu0 0.0
        %766 = vmatprep.subr.mxu0 0.0
        %767 = vmatpush2.msra.mxu0 0.0
        %768 = vmatprep.subr.mxu0 0.0
        %769 = vmatpush2.msra.mxu0 0.0
        %770 = vmatprep.subr.mxu0 0.0
        %771 = vmatpush2.msra.mxu0 0.0
        %772 = vmatprep.subr.mxu0 0.0
        %773 = vmatpush2.msra.mxu0 0.0
        %774 = vmatprep.subr.mxu0 0.0
        %775 = vmatpush2.msra.mxu0 0.0
        %776 = vmatprep.subr.mxu0 0.0
        %777 = vmatpush2.msra.mxu0 0.0
        %778 = vmatprep.subr.mxu0 0.0
        %779 = vmatpush2.msra.mxu0 0.0
        %780 = vmatprep.subr.mxu0 0.0
        %781 = vmatpush2.msra.mxu0 0.0
        %782 = vmatprep.subr.mxu0 0.0
        %783 = vmatpush2.msra.mxu0 0.0
        %784 = vmatprep.subr.mxu0 0.0
        %785 = vmatpush2.msra.mxu0 0.0
        %786 = vmatprep.subr.mxu0 0.0
        %787 = vmatpush2.msra.mxu0 0.0
        %788 = vmatprep.subr.mxu0 0.0
        %789 = vmatpush2.msra.mxu0 0.0
        %790 = vmatprep.subr.mxu0 0.0
        %791 = vmatpush2.msra.mxu0 0.0
        %792 = vmatprep.mubr.f32.mxu0 0.0
        %793 = vmatmul.mubr.f32.gmra.mxu0 %v717
        %v794 = vpop.f32.mrf.mxu0
        %v795 = vadd.f32 0.0, %v794
        %v796 = vpop.f32.mrf.mxu0
        %v797 = vadd.f32 0.0, %v796
        %798 = vmatprep.mubr.f32.mxu0 0.0
        %799 = vmatmul.mubr.f32.gmra.mxu0 %v720
        %v800 = vpop.f32.mrf.mxu0
        %v801 = vadd.f32 0.0, %v800
        %v802 = vpop.f32.mrf.mxu0
        %v803 = vadd.f32 0.0, %v802
        %804 = vmatprep.mubr.f32.mxu0 0.0
        %805 = vmatmul.mubr.f32.gmra.mxu0 %v723
        %v806 = vpop.f32.mrf.mxu0
        %v807 = vadd.f32 0.0, %v806
        %v808 = vpop.f32.mrf.mxu0
        %v809 = vadd.f32 0.0, %v808
        %810 = vmatprep.mubr.f32.mxu0 0.0
        %811 = vmatmul.mubr.f32.gmra.mxu0 %v726
        %v812 = vpop.f32.mrf.mxu0
        %v813 = vadd.f32 0.0, %v812
        %v814 = vpop.f32.mrf.mxu0
        %v815 = vadd.f32 0.0, %v814
        %816 = vdwg.mxu0
        %v817 = vadd.f32 %v689, %v795
        %v818 = vadd.f32 %v691, %v797
        %v819 = vadd.f32 %v695, %v801
        %v820 = vadd.f32 %v697, %v803
        %v821 = vadd.f32 %v701, %v807
        %v822 = vadd.f32 %v703, %v809
        %v823 = vadd.f32 %v707, %v813
        %v824 = vadd.f32 %v709, %v815
        %v825 = vld [vmem:[%s3] sm:$0x3]
        %v827 = vlaneseq
        %v828 = vshrl.u32 %v827, 7
        %v829 = vsub.s32 0, %v828
        %v830 = vrot.slane %v825, %v829
        %v831 = vlaneseq
        %v832 = vshrl.u32 %v831, 7
        %v833 = vsub.s32 1, %v832
        %v834 = vrot.slane %v825, %v833
        %v837 = vadd.f32 %v817, %v830
        %v838 = vadd.f32 %v818, %v834
        %v839 = vadd.f32 %v819, %v830
        %v840 = vadd.f32 %v820, %v834
        %v841 = vadd.f32 %v821, %v830
        %v842 = vadd.f32 %v822, %v834
        %v843 = vadd.f32 %v823, %v830
        %v844 = vadd.f32 %v824, %v834
        %845 = vst [vmem:[%s205] sm:$0xff] %v837
        %846 = vst [vmem:[%s205 + $0x8] sm:$0xff] %v838
        %847 = vst [vmem:[%s205 + $0x10] sm:$0xff] %v839
        %848 = vst [vmem:[%s205 + $0x18] sm:$0xff] %v840
        %849 = vst [vmem:[%s205 + $0x20] sm:$0xff] %v841
        %850 = vst [vmem:[%s205 + $0x28] sm:$0xff] %v842
        %851 = vst [vmem:[%s205 + $0x30] sm:$0xff] %v843
        %852 = vst [vmem:[%s205 + $0x38] sm:$0xff] %v844
        %s853 = sand.u32 %s116, 1
        %s854 = scalar_lea.sflag [#allocation4], %s853
        %s855 = sand.u32 %s116, 1
        %s856 = smul.addr %s855, 64
        %s857 = scalar_lea.vmem [#allocation5], %s856
        // Predicated region
        $region41: #{tpu_custom_call.1} parent=35 // pred_check
          %p858 = pneg %p126
        $region42: #{tpu_custom_call.1} parent=35 // pred_check_branch
          %860 = sbr.rel (%p858) target = $region44
        $region43: #{tpu_custom_call.1} parent=35 // pred_region
          %s862 = ssub.s32 1024, 1024
          %863 = vsyncadd %s854, %s862
          %s864 = smul.addr %s19, 8
          %s865 = smul.addr %s864, 128
          %s866 = scalar_lea.hbm %s4, %s865
          %s867 = sshll.u32 %s857, 4
          %s868 = int_to_ptr.vmem [resolvable:$true] %s867
          %873 = dma.vmem_to_hbm [thread:$0]  %s868, 1024, %s866, %s854, 256, 256, 16
        $region44: #{tpu_custom_call.1} parent=35 // pred_fallthru
          _
      $region36: #{tpu_custom_call.1} parent=5 // pred_fallthru
        _
      %p874 = scmp.le.s32.totalorder 2, %s14
      // Predicated region
      $region45: #{tpu_custom_call.1} parent=5 // pred_check
        %p875 = pneg %p874
      $region46: #{tpu_custom_call.1} parent=5 // pred_check_branch
        %877 = sbr.rel (%p875) target = $region48
      $region47: #{tpu_custom_call.1} parent=5 // pred_region
        %s878 = ssub.s32 %s14, 2
        // Predicated region
        $region49: #{tpu_custom_call.1} parent=47 // pred_check
          %p879 = pneg %p132
        $region50: #{tpu_custom_call.1} parent=47 // pred_check_branch
          %881 = sbr.rel (%p879) target = $region52
        $region51: #{tpu_custom_call.1} parent=47 // pred_region
          %s882 = sand.u32 %s117, 1
          %s883 = scalar_lea.sflag [#allocation4], %s882
          %s884 = sand.u32 %s117, 1
          %s885 = smul.addr %s884, 64
          %s886 = scalar_lea.vmem [#allocation5], %s885
          %887 = dma.done %s883, 1024
        $region52: #{tpu_custom_call.1} parent=47 // pred_fallthru
          _
      $region48: #{tpu_custom_call.1} parent=5 // pred_fallthru
        _
    $region6: #{tpu_custom_call.1} parent=1 // loop_footer
      %s18 = sadd.s32 1, %s14
    $region7: #{tpu_custom_call.1} parent=1 // loop_footer_branch
      %13 = sbr.rel target = $region3
    $region8: #{tpu_custom_call.1} parent=1 // loop_exit
      _
    %888 = vsyncpa [#allocation3], 1
    %s889 = scalar_lea.sflag [#allocation3], 1
    %890 = vsyncpa %s889, 1
    %891 = vsyncpa [#allocation4], 1
    %s892 = scalar_lea.sflag [#allocation4], 1
    %893 = vsyncpa %s892, 1

</llo_original>
